<compile_context>
chip_gen: v6e
topology: v6e:2x2x1
jax: 0.10.0
libtpu: 0.0.40
codegen_flags: <defaults>
</compile_context>

<pallas_src>
import functools

import jax
import jax.numpy as jnp
from jax.experimental import pallas as pl
from jax.experimental.pallas import tpu as pltpu

IN_FEATURES = 20
OUT_FEATURES = 30
PADDED_OUT = 128  # lane-dense output width (one full vreg lane dim)


def linear_kernel(x_ref, w_ref, b_ref, o_ref):
    # x_ref: (TB, 20), w_ref: (20, 128), b_ref: (1, 128), o_ref: (TB, 128)
    acc = jnp.dot(x_ref[...], w_ref[...], preferred_element_type=jnp.float32)
    o_ref[...] = (acc + b_ref[...]).astype(o_ref.dtype)


def _round_up(n, m):
    return ((n + m - 1) // m) * m


@functools.partial(jax.jit, static_argnames=("tb_max",))
def simple_params_forward(x, w_t, b, *, tb_max=512):
    """y = x @ w_t + b via a batch-tiled, lane-dense Pallas kernel.

    x:   (B, 20) float32
    w_t: (20, 30) float32   (transposed nn.Linear weight)
    b:   (30,)    float32
    returns (B, 30) in x.dtype
    """
    B = x.shape[0]
    dtype = x.dtype

    # Batch tile: multiple of 8 sublanes; pad B so the grid divides evenly.
    TB = min(tb_max, _round_up(B, 8))
    B_pad = _round_up(B, TB)
    if B_pad != B:
        x = jnp.pad(x, ((0, B_pad - B), (0, 0)))

    # Lane-dense (128-wide) weight / bias; zero padding keeps math exact.
    w_pad = jnp.zeros((IN_FEATURES, PADDED_OUT), dtype).at[:, :OUT_FEATURES].set(
        w_t.astype(dtype)
    )
    b_pad = jnp.zeros((1, PADDED_OUT), jnp.float32).at[:, :OUT_FEATURES].set(
        b.astype(jnp.float32)
    )

    grid = (B_pad // TB,)
    itemsize = jnp.dtype(dtype).itemsize
    cost = pl.CostEstimate(
        flops=2 * B_pad * IN_FEATURES * PADDED_OUT,
        transcendentals=0,
        bytes_accessed=(
            B_pad * IN_FEATURES * itemsize          # x read
            + B_pad * PADDED_OUT * itemsize          # y write
            + IN_FEATURES * PADDED_OUT * itemsize    # weight
            + PADDED_OUT * 4                         # bias
        ),
    )

    y_pad = pl.pallas_call(
        linear_kernel,
        out_shape=jax.ShapeDtypeStruct((B_pad, PADDED_OUT), dtype),
        grid_spec=pltpu.PrefetchScalarGridSpec(
            num_scalar_prefetch=0,
            grid=grid,
            in_specs=[
                # x: new batch tile each step (last dim = full 20, exception ok).
                pl.BlockSpec((TB, IN_FEATURES), lambda i: (i, 0)),
                # weight/bias: constant index_map -> VMEM-resident across steps.
                pl.BlockSpec((IN_FEATURES, PADDED_OUT), lambda i: (0, 0)),
                pl.BlockSpec((1, PADDED_OUT), lambda i: (0, 0)),
            ],
            out_specs=pl.BlockSpec((TB, PADDED_OUT), lambda i: (i, 0)),
        ),
        compiler_params=pltpu.CompilerParams(
            # Batch axis is embarrassingly parallel -> lets v7x split it
            # across both TensorCores; harmless on v5e/v6e.
            dimension_semantics=("parallel",),
            vmem_limit_bytes=64 << 20,
        ),
        cost_estimate=cost,
    )(x, w_pad, b_pad)

    return y_pad[:B, :OUT_FEATURES]


def init_params(key):
    """Deterministic init mimicking nn.Linear default (uniform +/- 1/sqrt(fan_in))."""
    kw, kb = jax.random.split(key)
    bound = 1.0 / jnp.sqrt(jnp.float32(IN_FEATURES))
    # PyTorch stores weight as (out, in); we keep the transposed (in, out) layout.
    w_t = jax.random.uniform(
        kw, (IN_FEATURES, OUT_FEATURES), jnp.float32, minval=-bound, maxval=bound
    )
    b = jax.random.uniform(
        kb, (OUT_FEATURES,), jnp.float32, minval=-bound, maxval=bound
    )
    return w_t, b


if __name__ == "__main__":
    key = jax.random.PRNGKey(0)
    k_in, k_params = jax.random.split(key)

    batch = 8
    x = jax.random.normal(k_in, (batch, IN_FEATURES), jnp.float32)
    w_t, b = init_params(k_params)

    y = simple_params_forward(x, w_t, b)
    y = jax.block_until_ready(y)

    # Sanity check against plain-JAX reference.
    y_ref = x @ w_t + b
    assert y.shape == (batch, OUT_FEATURES)
    assert jnp.allclose(y, y_ref, atol=1e-5, rtol=1e-5)

    print("KERNEL_OK")
</pallas_src>

<mosaic_0001>
module attributes {stable_mosaic.version = 11 : i64} {
  func.func @linear_kernel(%arg0: i32, %arg1: memref<8x20xf32, #tpu.memory_space<vmem>>, %arg2: memref<20x128xf32, #tpu.memory_space<vmem>>, %arg3: memref<1x128xf32, #tpu.memory_space<vmem>>, %arg4: memref<8x128xf32, #tpu.memory_space<vmem>>) attributes {dimension_semantics = [#tpu.dimension_semantics<parallel>], iteration_bounds = array<i64: 1>, scalar_prefetch = 0 : i64, scratch_operands = 0 : i64, tpu.core_type = #tpu.core_type<tc>, window_params = [{transform_indices = @transform_0, window_bounds = array<i64: 8, 20>}, {pipeline_mode = #tpu.pipeline_mode<synchronous>, transform_indices = @transform_1, window_bounds = array<i64: 20, 128>}, {pipeline_mode = #tpu.pipeline_mode<synchronous>, transform_indices = @transform_2, window_bounds = array<i64: 1, 128>}, {transform_indices = @transform_3, window_bounds = array<i64: 8, 128>}]} {
    %c0 = arith.constant 0 : index
    %c0_0 = arith.constant 0 : index
    %0 = vector.load %arg1[%c0, %c0_0] : memref<8x20xf32, #tpu.memory_space<vmem>>, vector<8x20xf32>
    %c0_1 = arith.constant 0 : index
    %c0_2 = arith.constant 0 : index
    %1 = vector.load %arg2[%c0_1, %c0_2] : memref<20x128xf32, #tpu.memory_space<vmem>>, vector<20x128xf32>
    %cst = arith.constant dense<0.000000e+00> : vector<8x128xf32>
    %2 = tpu.matmul %0, %1, %cst {dimension_numbers = #tpu.dot_dimension_numbers<[1], [0], [0], [1], [0, 0, 1, 1], [], []>} : vector<8x20xf32>, vector<20x128xf32>, vector<8x128xf32> -> vector<8x128xf32>
    %c0_3 = arith.constant 0 : index
    %c0_4 = arith.constant 0 : index
    %3 = vector.load %arg3[%c0_3, %c0_4] : memref<1x128xf32, #tpu.memory_space<vmem>>, vector<1x128xf32>
    %4 = vector.broadcast %3 : vector<1x128xf32> to vector<8x128xf32>
    %5 = arith.addf %2, %4 : vector<8x128xf32>
    %c0_5 = arith.constant 0 : index
    %c0_6 = arith.constant 0 : index
    %6 = vector.load %arg4[%c0_5, %c0_6] : memref<8x128xf32, #tpu.memory_space<vmem>>, vector<8x128xf32>
    tpu.vector_store %arg4[%c0_5, %c0_6], %5 {strides = array<i32>} : memref<8x128xf32, #tpu.memory_space<vmem>>, vector<8x128xf32>,
    return
  }
  func.func @transform_0(%arg0: i32) -> (i32, i32) {
    %c0_i32 = arith.constant 0 : i32
    %c0_i32_0 = arith.constant 0 : i32
    return %arg0, %c0_i32 : i32, i32
  }
  func.func @transform_1(%arg0: i32) -> (i32, i32) {
    %c0_i32 = arith.constant 0 : i32
    %c0_i32_0 = arith.constant 0 : i32
    %c0_i32_1 = arith.constant 0 : i32
    return %c0_i32, %c0_i32_0 : i32, i32
  }
  func.func @transform_2(%arg0: i32) -> (i32, i32) {
    %c0_i32 = arith.constant 0 : i32
    %c0_i32_0 = arith.constant 0 : i32
    %c0_i32_1 = arith.constant 0 : i32
    return %c0_i32, %c0_i32_0 : i32, i32
  }
  func.func @transform_3(%arg0: i32) -> (i32, i32) {
    %c0_i32 = arith.constant 0 : i32
    %c0_i32_0 = arith.constant 0 : i32
    return %arg0, %c0_i32 : i32, i32
  }
}

</mosaic_0001>

<llo_original>
// kernel: simple_params_forward.1
$region0: #{simple_params_forward.1}
  #allocation0 [shape = 'u32[]', space=smem, size = 0x4, offset = 0x4, fixed_abs, tag = 'smem constant byte address 0x4 - core index']
  #allocation1 [shape = 'u32[144,128]{1,0:T(1,128)}', space=vmem, size = 0x12000, scoped, tag = 'internal scratch']
  %s0 = inlined_call_operand.vmem [shape: f32[8,20], index: 0, kind: input, shape index: {}]
  %s1 = inlined_call_operand.vmem [shape: f32[20,128], index: 1, kind: input, shape index: {}]
  %s2 = inlined_call_operand.vmem [shape: f32[1,128], index: 2, kind: input, shape index: {}]
  %s3 = inlined_call_operand.hbm [shape: f32[8,128], index: 3, kind: output, shape index: {}]
  %s4 = sld [smem:[#allocation0]]
  $region22: #{simple_params_forward.1} parent=0
    _
  %s6 = ssub.s32 1, %s4
  %s7 = scalar_select 0, %s6, %s4
  $region1: #{simple_params_forward.1} parent=0
    #allocation2 [shape = 'u8[4096]{0}', space=vmem, size = 0x1000, scoped, tag = 'output window, operand 0, single buffered']
    #allocation3 [shape = 's32[1]{0}', space=sflag, size = 0x4, scoped, tag = 'scoped memory for simple_params_forward.1']
    %8 = vsyncpa [#allocation3], 0
    // Predicated region
    $region2: #{simple_params_forward.1} parent=1 // pred_check
      _
    $region3: #{simple_params_forward.1} parent=1 // pred_check_branch
      %10 = sbr.rel (0) target = $region5
    $region4: #{simple_params_forward.1} parent=1 // pred_region
      _
    $region5: #{simple_params_forward.1} parent=1 // pred_fallthru
      _
    // Predicated region
    $region6: #{simple_params_forward.1} parent=1 // pred_check
      _
    $region7: #{simple_params_forward.1} parent=1 // pred_check_branch
      %12 = sbr.rel (0) target = $region9
    $region8: #{simple_params_forward.1} parent=1 // pred_region
      _
    $region9: #{simple_params_forward.1} parent=1 // pred_fallthru
      _
    // Predicated region
    $region10: #{simple_params_forward.1} parent=1 // pred_check
      _
    $region11: #{simple_params_forward.1} parent=1 // pred_check_branch
      %14 = sbr.rel (0) target = $region13
    $region12: #{simple_params_forward.1} parent=1 // pred_region
      _
    $region13: #{simple_params_forward.1} parent=1 // pred_fallthru
      _
    %v15 = vld [vmem:[%s0] sm:$0xff]
    %v16 = vld [vmem:[%s1] sm:$0xff]
    %v17 = vld [vmem:[%s1 + $0x8] sm:$0xff]
    %v18 = vld [vmem:[%s1 + $0x10] sm:$0xf]
    %v19 = vld [vmem:[%s2] sm:$0x1]
    %v21 = vlaneseq
    %v22 = vshrl.u32 %v21, 7
    %v23 = vsub.s32 0, %v22
    %v24 = vrot.slane %v19, %v23
    %vm26 = vcmask 162816
    %v28 = vsel %vm26, %v15, 0
    %vm30 = vcmask 1043456
    %v32 = vsel %vm30, %v18, 0
    %34 = vmatprep.subr.mxu0 0.0
    %35 = vmatpush1.msra.mxu0 0.0
    %36 = vmatprep.subr.mxu0 0.0
    %37 = vmatpush1.msra.mxu0 0.0
    %38 = vmatprep.subr.mxu0 0.0
    %39 = vmatpush1.msra.mxu0 0.0
    %40 = vmatprep.subr.mxu0 0.0
    %41 = vmatpush1.msra.mxu0 0.0
    %42 = vmatprep.subr.mxu0 0.0
    %43 = vmatpush1.msra.mxu0 0.0
    %44 = vmatprep.subr.mxu0 0.0
    %45 = vmatpush1.msra.mxu0 0.0
    %46 = vmatprep.subr.mxu0 0.0
    %47 = vmatpush1.msra.mxu0 0.0
    %48 = vmatprep.subr.mxu0 0.0
    %49 = vmatpush1.msra.mxu0 0.0
    %50 = vmatprep.subr.mxu0 0.0
    %51 = vmatpush1.msra.mxu0 0.0
    %52 = vmatprep.subr.mxu0 0.0
    %53 = vmatpush1.msra.mxu0 0.0
    %54 = vmatprep.subr.mxu0 0.0
    %55 = vmatpush1.msra.mxu0 0.0
    %56 = vmatprep.subr.mxu0 0.0
    %57 = vmatpush1.msra.mxu0 0.0
    %58 = vmatprep.subr.mxu0 0.0
    %59 = vmatpush1.msra.mxu0 0.0
    %60 = vmatprep.subr.mxu0 0.0
    %61 = vmatpush1.msra.mxu0 %v32
    %62 = vmatprep.subr.mxu0 0.0
    %63 = vmatpush1.msra.mxu0 %v17
    %64 = vmatprep.subr.mxu0 0.0
    %65 = vmatpush1.msra.mxu0 %v16
    %66 = vmatprep.subr.mxu0 0.0
    %67 = vmatpush2.msra.mxu0 0.0
    %68 = vmatprep.subr.mxu0 0.0
    %69 = vmatpush2.msra.mxu0 0.0
    %70 = vmatprep.subr.mxu0 0.0
    %71 = vmatpush2.msra.mxu0 0.0
    %72 = vmatprep.subr.mxu0 0.0
    %73 = vmatpush2.msra.mxu0 0.0
    %74 = vmatprep.subr.mxu0 0.0
    %75 = vmatpush2.msra.mxu0 0.0
    %76 = vmatprep.subr.mxu0 0.0
    %77 = vmatpush2.msra.mxu0 0.0
    %78 = vmatprep.subr.mxu0 0.0
    %79 = vmatpush2.msra.mxu0 0.0
    %80 = vmatprep.subr.mxu0 0.0
    %81 = vmatpush2.msra.mxu0 0.0
    %82 = vmatprep.subr.mxu0 0.0
    %83 = vmatpush2.msra.mxu0 0.0
    %84 = vmatprep.subr.mxu0 0.0
    %85 = vmatpush2.msra.mxu0 0.0
    %86 = vmatprep.subr.mxu0 0.0
    %87 = vmatpush2.msra.mxu0 0.0
    %88 = vmatprep.subr.mxu0 0.0
    %89 = vmatpush2.msra.mxu0 0.0
    %90 = vmatprep.subr.mxu0 0.0
    %91 = vmatpush2.msra.mxu0 0.0
    %92 = vmatprep.subr.mxu0 0.0
    %93 = vmatpush2.msra.mxu0 0.0
    %94 = vmatprep.subr.mxu0 0.0
    %95 = vmatpush2.msra.mxu0 0.0
    %96 = vmatprep.subr.mxu0 0.0
    %97 = vmatpush2.msra.mxu0 0.0
    %98 = vmatprep.mubr.f32.mxu0 0.0
    %99 = vmatmul.mubr.f32.gmra.mxu0 %v28
    %v100 = vpop.f32.mrf.mxu0
    %v101 = vadd.f32 %v24, %v100
    %v102 = vpop.f32.mrf.mxu0
    %103 = vdwg.mxu0
    %104 = vst [vmem:[#allocation2] sm:$0xff] %v101
    // Predicated region
    $region14: #{simple_params_forward.1} parent=1 // pred_check
      _
    $region15: #{simple_params_forward.1} parent=1 // pred_check_branch
      %106 = sbr.rel (0) target = $region17
    $region16: #{simple_params_forward.1} parent=1 // pred_region
      %s108 = ssub.s32 128, 128
      %109 = vsyncadd [#allocation3], %s108
      %s111 = sshll.u32 [#allocation2], 4
      %s112 = int_to_ptr.vmem [resolvable:$true] %s111
      %114 = dma.vmem_to_hbm [thread:$0]  %s112, 128, %s3, [#allocation3]
    $region17: #{simple_params_forward.1} parent=1 // pred_fallthru
      _
    // Predicated region
    $region18: #{simple_params_forward.1} parent=1 // pred_check
      _
    $region19: #{simple_params_forward.1} parent=1 // pred_check_branch
      %116 = sbr.rel (0) target = $region21
    $region20: #{simple_params_forward.1} parent=1 // pred_region
      %117 = dma.done [#allocation3], 128
    $region21: #{simple_params_forward.1} parent=1 // pred_fallthru
      _
    %118 = vsyncpa [#allocation3], 1

</llo_original>
